<compile_context>
chip_gen: v5e
topology: v5e:2x2
jax: 0.10.0
libtpu: 0.0.40
codegen_flags: <defaults>
</compile_context>

<pallas_src>
import functools

import jax
import jax.numpy as jnp
from jax import lax
from jax.experimental import pallas as pl
from jax.experimental.pallas import tpu as pltpu

LANES = 128
SUBLANES = 8
BLOCK_ELEMS = SUBLANES * LANES  # 1024: minimum element granularity for the kernel


def _is_v7x():
    try:
        return "v7" in jax.devices()[0].device_kind.lower()
    except Exception:  # pragma: no cover - device query should not fail
        return False


def _acc_rows_for(row_tile):
    # Largest accumulator height (multiple of 8) dividing row_tile; keeps the
    # per-vreg accumulation chains short (throughput- not latency-bound).
    for a in (64, 32, 16, 8):
        if row_tile % a == 0:
            return a
    return row_tile  # unreachable: row_tile is always a multiple of 8


def _rmse_partial_kernel(yh_ref, y_ref, out_ref, acc_ref, *, row_tile,
                         acc_rows, lanes, rows, nb, bps, ragged, clamped):
    """Accumulate per-(sublane, lane) partials of (y_hat - y)^2 in VMEM scratch
    and write one f32 scalar per shard on the last reduction step."""
    s = pl.program_id(0)
    j = pl.program_id(1)
    g = s * bps + j  # global (unclamped) row-block id

    @pl.when(j == 0)
    def _():
        acc_ref[...] = jnp.zeros_like(acc_ref)

    def partial_sum(mask_tail):
        d = yh_ref[...].astype(jnp.float32) - y_ref[...].astype(jnp.float32)
        sq = d * d
        if mask_tail:
            row_ids = g * row_tile + lax.broadcasted_iota(
                jnp.int32, (row_tile, lanes), 0)
            # Keep the select form: NaN/Inf from unspecified padding rows must
            # not propagate (do NOT replace with a multiply-by-mask).
            sq = jnp.where(row_ids < rows, sq, jnp.float32(0.0))
        # (row_tile, lanes) -> (row_tile//acc_rows, acc_rows, lanes) splits the
        # row axis on vreg-tile boundaries; the leading-axis sum is pure
        # element-wise VPU work (no cross-lane XLU).
        return jnp.sum(sq.reshape(row_tile // acc_rows, acc_rows, lanes),
                       axis=0)

    if not ragged and not clamped:
        # Clean common case: no masking, no gating at all.
        acc_ref[...] += partial_sum(False)
    else:
        full_limit = nb - 1 if ragged else nb

        @pl.when(g < full_limit)
        def _():
            acc_ref[...] += partial_sum(False)

        if ragged:
            # Only the single ragged trailing block pays the iota+select cost.
            @pl.when(g == nb - 1)
            def _():
                acc_ref[...] += partial_sum(True)
        # Clamped duplicate blocks (g >= nb) contribute nothing.

    @pl.when(j == bps - 1)
    def _():
        # One-off cross-lane/sublane reduce; the XLU slot is idle (DMA-bound),
        # so this is free and removes a separate XLA reduce fusion.
        out_ref[...] = jnp.sum(acc_ref[...]).reshape(1, 1)


def rmse_loss(y_hat, y, eps=1e-6, *, _max_block_bytes=None):
    """Root mean squared error: sqrt(mean((y_hat - y)^2) + eps).

    Matches torch.sqrt(nn.MSELoss()(y_hat, y) + eps) (scalar output).
    """
    assert y_hat.shape == y.shape, "y_hat and y must have the same shape"
    n_elems = y_hat.size
    assert n_elems > 0, "empty input"

    yh_flat = jnp.ravel(y_hat)
    y_flat = jnp.ravel(y)

    # Largest 1024-aligned prefix goes through the kernel; the tiny remainder
    # is summed in plain JAX (no padded copies of the full inputs).
    main_elems = (n_elems // BLOCK_ELEMS) * BLOCK_ELEMS
    tail_elems = n_elems - main_elems

    total = jnp.float32(0.0)

    if tail_elems:
        dt = (yh_flat[main_elems:].astype(jnp.float32)
              - y_flat[main_elems:].astype(jnp.float32))
        total = total + jnp.sum(dt * dt)

    if main_elems:
        rows = main_elems // LANES  # multiple of 8
        yh2d = yh_flat[:main_elems].reshape(rows, LANES)
        y2d = y_flat[:main_elems].reshape(rows, LANES)

        itemsize = jnp.dtype(y_hat.dtype).itemsize
        on_v7x = _is_v7x()
        if _max_block_bytes is None:
            # Constant-byte blocks regardless of dtype: ~2 MiB (4 MiB on v7x
            # where 3.2 TB/s HBM makes the ~0.35us per-step overhead costly).
            _max_block_bytes = (4 << 20) if on_v7x else (2 << 20)
        max_rows = max(SUBLANES,
                       (_max_block_bytes // (LANES * itemsize))
                       // SUBLANES * SUBLANES)
        row_tile = min(max_rows, rows)  # multiple of 8
        acc_rows = _acc_rows_for(row_tile)

        nb = pl.cdiv(rows, row_tile)            # total row-blocks
        num_shards = 2 if nb >= 2 else 1        # v7x: one half per TensorCore
        bps = pl.cdiv(nb, num_shards)           # row-blocks per shard
        ragged = (rows % row_tile) != 0         # trailing partial row-block
        clamped = (num_shards * bps) != nb      # shard has a duplicate block

        if clamped:
            in_map = lambda s, j: (jnp.minimum(s * bps + j, nb - 1), 0)
        else:
            in_map = lambda s, j: (s * bps + j, 0)

        kernel = functools.partial(
            _rmse_partial_kernel, row_tile=row_tile, acc_rows=acc_rows,
            lanes=LANES, rows=rows, nb=nb, bps=bps, ragged=ragged,
            clamped=clamped)

        vmem_limit = (40 << 20) if on_v7x else (32 << 20)

        shard_sums = pl.pallas_call(
            kernel,
            out_shape=jax.ShapeDtypeStruct((num_shards, 1), jnp.float32),
            grid_spec=pltpu.PrefetchScalarGridSpec(
                num_scalar_prefetch=0,
                grid=(num_shards, bps),
                in_specs=[
                    pl.BlockSpec((row_tile, LANES), in_map),
                    pl.BlockSpec((row_tile, LANES), in_map),
                ],
                out_specs=pl.BlockSpec((1, 1), lambda s, j: (s, 0)),
                scratch_shapes=[pltpu.VMEM((acc_rows, LANES), jnp.float32)],
            ),
            compiler_params=pltpu.CompilerParams(
                dimension_semantics=(pltpu.PARALLEL, pltpu.ARBITRARY),
                vmem_limit_bytes=vmem_limit),
            cost_estimate=pl.CostEstimate(
                flops=3 * main_elems,
                transcendentals=0,
                bytes_accessed=2 * main_elems * itemsize + num_shards * 4),
        )(yh2d, y2d)

        total = total + jnp.sum(shard_sums)

    return jnp.sqrt(total / jnp.float32(n_elems) + jnp.float32(eps))


if __name__ == "__main__":
    key = jax.random.PRNGKey(0)
    k1, k2, k3, k4 = jax.random.split(key, 4)

    def ref_rmse(a, b, eps=1e-6):
        d = a.astype(jnp.float32) - b.astype(jnp.float32)
        return jnp.sqrt(jnp.mean(d * d) + eps)

    # Small NCHW-like regression shapes (the spec's y_hat / y).
    x_shape = (2, 4, 16, 16)
    y_hat = jax.random.normal(k1, x_shape, dtype=jnp.float32)
    y = jax.random.normal(k2, x_shape, dtype=jnp.float32)
    loss = rmse_loss(y_hat, y, eps=1e-6)
    jax.block_until_ready(loss)
    assert jnp.allclose(loss, ref_rmse(y_hat, y), rtol=1e-5, atol=1e-6), (
        loss, ref_rmse(y_hat, y))

    # Odd element count: <1024-element tail folded into the wrapper sum.
    a2 = jax.random.normal(k3, (3, 5, 7, 11), dtype=jnp.float32)
    b2 = jax.random.normal(k4, (3, 5, 7, 11), dtype=jnp.float32)
    l2 = rmse_loss(a2, b2)
    jax.block_until_ready(l2)
    assert jnp.allclose(l2, ref_rmse(a2, b2), rtol=1e-5, atol=1e-6), (
        l2, ref_rmse(a2, b2))

    # Multi-block / two-shard path with a clamped duplicate block (bf16 input).
    a3 = jax.random.normal(k1, (24, 128), dtype=jnp.bfloat16)
    b3 = jax.random.normal(k2, (24, 128), dtype=jnp.bfloat16)
    l3 = rmse_loss(a3, b3, _max_block_bytes=8 * LANES * 2)  # 8-row bf16 blocks
    jax.block_until_ready(l3)
    assert jnp.allclose(l3, ref_rmse(a3, b3), rtol=1e-3, atol=1e-3), (
        l3, ref_rmse(a3, b3))

    # Ragged trailing row-block (rows % row_tile != 0), masked in-kernel.
    l4 = rmse_loss(a3.astype(jnp.float32), b3.astype(jnp.float32),
                   _max_block_bytes=16 * LANES * 4)          # 16-row f32 blocks
    jax.block_until_ready(l4)
    assert jnp.allclose(l4, ref_rmse(a3, b3), rtol=1e-5, atol=1e-5), (
        l4, ref_rmse(a3, b3))

    print("KERNEL_OK")
</pallas_src>

<mosaic_0001>
module attributes {stable_mosaic.version = 11 : i64} {
  func.func @_rmse_partial_kernel(%arg0: i32, %arg1: i32, %arg2: memref<16x128xf32, #tpu.memory_space<vmem>>, %arg3: memref<16x128xf32, #tpu.memory_space<vmem>>, %arg4: memref<1x1xf32, #tpu.memory_space<vmem>>, %arg5: memref<16x128xf32, #tpu.memory_space<vmem>>) attributes {dimension_semantics = [#tpu.dimension_semantics<parallel>, #tpu.dimension_semantics<arbitrary>], iteration_bounds = array<i64: 1, 1>, scalar_prefetch = 0 : i64, scratch_operands = 1 : i64, tpu.core_type = #tpu.core_type<tc>, window_params = [{transform_indices = @transform_0, window_bounds = array<i64: 16, 128>}, {transform_indices = @transform_1, window_bounds = array<i64: 16, 128>}, {transform_indices = @transform_2, window_bounds = array<i64: 1, 1>}]} {
    %c0_i32 = arith.constant 0 : i32
    %0 = arith.cmpi eq, %arg1, %c0_i32 : i32
    %1 = arith.extui %0 : i1 to i32
    %c0_i32_0 = arith.constant 0 : i32
    %2 = arith.cmpi ne, %1, %c0_i32_0 : i32
    scf.if %2 {
      %cst_10 = arith.constant 0.000000e+00 : f32
      %15 = vector.broadcast %cst_10 : f32 to vector<16x128xf32>
      %c0_11 = arith.constant 0 : index
      %c0_12 = arith.constant 0 : index
      %16 = vector.load %arg5[%c0_11, %c0_12] : memref<16x128xf32, #tpu.memory_space<vmem>>, vector<16x128xf32>
      tpu.vector_store %arg5[%c0_11, %c0_12], %15 {strides = array<i32>} : memref<16x128xf32, #tpu.memory_space<vmem>>, vector<16x128xf32>,
    } else {
    }
    %c0 = arith.constant 0 : index
    %c0_1 = arith.constant 0 : index
    %3 = vector.load %arg5[%c0, %c0_1] : memref<16x128xf32, #tpu.memory_space<vmem>>, vector<16x128xf32>
    %c0_2 = arith.constant 0 : index
    %c0_3 = arith.constant 0 : index
    %4 = vector.load %arg2[%c0_2, %c0_3] : memref<16x128xf32, #tpu.memory_space<vmem>>, vector<16x128xf32>
    %c0_4 = arith.constant 0 : index
    %c0_5 = arith.constant 0 : index
    %5 = vector.load %arg3[%c0_4, %c0_5] : memref<16x128xf32, #tpu.memory_space<vmem>>, vector<16x128xf32>
    %6 = arith.subf %4, %5 : vector<16x128xf32>
    %7 = arith.mulf %6, %6 : vector<16x128xf32>
    %8 = vector.shape_cast %7 : vector<16x128xf32> to vector<1x16x128xf32>
    %cst = arith.constant dense<0.000000e+00> : vector<16x128xf32>
    %9 = vector.multi_reduction <add>, %8, %cst [0] : vector<1x16x128xf32> to vector<16x128xf32>
    %10 = arith.addf %3, %9 : vector<16x128xf32>
    %c0_6 = arith.constant 0 : index
    %c0_7 = arith.constant 0 : index
    %11 = vector.load %arg5[%c0_6, %c0_7] : memref<16x128xf32, #tpu.memory_space<vmem>>, vector<16x128xf32>
    tpu.vector_store %arg5[%c0_6, %c0_7], %10 {strides = array<i32>} : memref<16x128xf32, #tpu.memory_space<vmem>>, vector<16x128xf32>,
    %c0_i32_8 = arith.constant 0 : i32
    %12 = arith.cmpi eq, %arg1, %c0_i32_8 : i32
    %13 = arith.extui %12 : i1 to i32
    %c0_i32_9 = arith.constant 0 : i32
    %14 = arith.cmpi ne, %13, %c0_i32_9 : i32
    scf.if %14 {
      %c0_10 = arith.constant 0 : index
      %c0_11 = arith.constant 0 : index
      %15 = vector.load %arg5[%c0_10, %c0_11] : memref<16x128xf32, #tpu.memory_space<vmem>>, vector<16x128xf32>
      %16 = vector.shape_cast %15 : vector<16x128xf32> to vector<1x16x128xf32>
      %cst_12 = arith.constant dense<0.000000e+00> : vector<1xf32>
      %17 = vector.multi_reduction <add>, %16, %cst_12 [1, 2] : vector<1x16x128xf32> to vector<1xf32>
      %18 = vector.shape_cast %17 : vector<1xf32> to vector<1x1x1xf32>
      %19 = vector.extract %18[0, 0, 0] : f32 from vector<1x1x1xf32>
      %20 = vector.broadcast %19 : f32 to vector<1x1xf32>
      %c0_13 = arith.constant 0 : index
      %c0_14 = arith.constant 0 : index
      %21 = vector.load %arg4[%c0_13, %c0_14] : memref<1x1xf32, #tpu.memory_space<vmem>>, vector<1x1xf32>
      tpu.vector_store %arg4[%c0_13, %c0_14], %20 {strides = array<i32>} : memref<1x1xf32, #tpu.memory_space<vmem>>, vector<1x1xf32>,
    } else {
    }
    return
  }
  func.func @transform_0(%arg0: i32, %arg1: i32) -> (i32, i32) {
    %c1_i32 = arith.constant 1 : i32
    %0 = arith.muli %arg0, %c1_i32 : i32
    %1 = arith.addi %0, %arg1 : i32
    %c0_i32 = arith.constant 0 : i32
    %c0_i32_0 = arith.constant 0 : i32
    return %1, %c0_i32 : i32, i32
  }
  func.func @transform_1(%arg0: i32, %arg1: i32) -> (i32, i32) {
    %c1_i32 = arith.constant 1 : i32
    %0 = arith.muli %arg0, %c1_i32 : i32
    %1 = arith.addi %0, %arg1 : i32
    %c0_i32 = arith.constant 0 : i32
    %c0_i32_0 = arith.constant 0 : i32
    return %1, %c0_i32 : i32, i32
  }
  func.func @transform_2(%arg0: i32, %arg1: i32) -> (i32, i32) {
    %c0_i32 = arith.constant 0 : i32
    %c0_i32_0 = arith.constant 0 : i32
    return %arg0, %c0_i32 : i32, i32
  }
}

</mosaic_0001>

<llo_original>
// kernel: tpu_custom_call.1
$region0: #{tpu_custom_call.1}
  #allocation0 [shape = 'u32[]', space=smem, size = 0x4, offset = 0x4, fixed_abs, tag = 'smem constant byte address 0x4 - core index']
  #allocation1 [shape = 'u32[72,128]{1,0:T(1,128)}', space=vmem, size = 0x9000, scoped, tag = 'internal scratch']
  #allocation2 [shape = 'f32[16,128]{1,0:T(8,128)}', space=vmem, size = 0x2000, scoped, tag = 'scratch operand']
  %s0 = inlined_call_operand.hbm [shape: f32[16,128], index: 0, kind: input, shape index: {}]
  %s1 = inlined_call_operand.hbm [shape: f32[16,128], index: 1, kind: input, shape index: {}]
  %s2 = inlined_call_operand.hbm [shape: f32[1,1], index: 2, kind: output, shape index: {}]
  %s3 = sld [smem:[#allocation0]]
  $region34: #{tpu_custom_call.1} parent=0
    _
  %s5 = ssub.s32 1, %s3
  %s6 = scalar_select 0, %s5, %s3
  $region1: #{tpu_custom_call.1} parent=0
    #allocation3 [shape = 'u8[8192]{0}', space=vmem, size = 0x2000, scoped, tag = 'input window, operand 0, single buffered']
    #allocation4 [shape = 's32[1]{0}', space=sflag, size = 0x4, scoped, tag = 'scoped memory for tpu_custom_call.1']
    #allocation5 [shape = 's32[1]{0}', space=sflag, size = 0x4, scoped, tag = 'scoped memory for tpu_custom_call.1']
    #allocation6 [shape = 'u8[8192]{0}', space=vmem, size = 0x2000, scoped, tag = 'input window, operand 1, single buffered']
    #allocation7 [shape = 's32[1]{0}', space=sflag, size = 0x4, scoped, tag = 'scoped memory for tpu_custom_call.1']
    #allocation8 [shape = 'u8[512]{0}', space=vmem, size = 0x400, scoped, tag = 'output window, operand 0, single buffered']
    %7 = vsyncpa [#allocation4], 0
    %8 = vsyncpa [#allocation7], 0
    %9 = vsyncpa [#allocation5], 0
    // Predicated region
    $region2: #{tpu_custom_call.1} parent=1 // pred_check
      _
    $region3: #{tpu_custom_call.1} parent=1 // pred_check_branch
      %11 = sbr.rel (0) target = $region5
    $region4: #{tpu_custom_call.1} parent=1 // pred_region
      %s12 = sadd.s32 0, 0
      %s13 = smul.u32 2, %s12
      %15 = vsyncadd [#allocation4], 0
      %s16 = smul.addr %s13, 8
      %s17 = scalar_lea.hbm %s0, %s16
      %s18 = sshll.u32 %s17, 4
      %s19 = int_to_ptr.hbm [resolvable:$true] %s18
      %s20 = sshll.u32 [#allocation3], 4
      %s21 = int_to_ptr.vmem [resolvable:$true] %s20
      %26 = dma.hbm_to_vmem [thread:$0]  %s19, 256, %s21, [#allocation4], 128, 128, 8
    $region5: #{tpu_custom_call.1} parent=1 // pred_fallthru
      _
    // Predicated region
    $region6: #{tpu_custom_call.1} parent=1 // pred_check
      _
    $region7: #{tpu_custom_call.1} parent=1 // pred_check_branch
      %28 = sbr.rel (0) target = $region9
    $region8: #{tpu_custom_call.1} parent=1 // pred_region
      %s29 = sadd.s32 0, 0
      %s30 = smul.u32 2, %s29
      %32 = vsyncadd [#allocation7], 0
      %s33 = smul.addr %s30, 8
      %s34 = scalar_lea.hbm %s1, %s33
      %s35 = sshll.u32 %s34, 4
      %s36 = int_to_ptr.hbm [resolvable:$true] %s35
      %s37 = sshll.u32 [#allocation6], 4
      %s38 = int_to_ptr.vmem [resolvable:$true] %s37
      %43 = dma.hbm_to_vmem [thread:$0]  %s36, 256, %s38, [#allocation7], 128, 128, 8
    $region9: #{tpu_custom_call.1} parent=1 // pred_fallthru
      _
    // Predicated region
    $region10: #{tpu_custom_call.1} parent=1 // pred_check
      _
    $region11: #{tpu_custom_call.1} parent=1 // pred_check_branch
      %45 = sbr.rel (0) target = $region13
    $region12: #{tpu_custom_call.1} parent=1 // pred_region
      %47 = dma.done [#allocation4], 256
    $region13: #{tpu_custom_call.1} parent=1 // pred_fallthru
      _
    // Predicated region
    $region14: #{tpu_custom_call.1} parent=1 // pred_check
      _
    $region15: #{tpu_custom_call.1} parent=1 // pred_check_branch
      %49 = sbr.rel (0) target = $region17
    $region16: #{tpu_custom_call.1} parent=1 // pred_region
      %51 = dma.done [#allocation7], 256
    $region17: #{tpu_custom_call.1} parent=1 // pred_fallthru
      _
    %s52 = sadd.s32 0, 0
    %s53 = smul.u32 2, %s52
    %s54 = sadd.s32 0, 0
    %s55 = smul.u32 2, %s54
    %p56 = scmp.eq.s32.totalorder 0, 0
    // Predicated region
    $region18: #{tpu_custom_call.1} parent=1 // pred_check
      %p57 = pneg %p56
    $region19: #{tpu_custom_call.1} parent=1 // pred_check_branch
      %59 = sbr.rel (%p57) target = $region21
    $region20: #{tpu_custom_call.1} parent=1 // pred_region
      %60 = vst [vmem:[#allocation2] sm:$0xff] 0.0
      %61 = vst [vmem:[#allocation2 + $0x8] sm:$0xff] 0.0
    $region21: #{tpu_custom_call.1} parent=1 // pred_fallthru
      _
    %v62 = vld [vmem:[#allocation2] sm:$0xff]
    %v63 = vld [vmem:[#allocation2 + $0x8] sm:$0xff]
    %v64 = vld [vmem:[#allocation3] sm:$0xff]
    %v65 = vld [vmem:[#allocation3 + $0x8] sm:$0xff]
    %v66 = vld [vmem:[#allocation6] sm:$0xff]
    %v67 = vld [vmem:[#allocation6 + $0x8] sm:$0xff]
    %v68 = vsub.f32 %v64, %v66
    %v69 = vsub.f32 %v65, %v67
    %v70 = vmul.f32 %v68, %v68
    %v71 = vmul.f32 %v69, %v69
    %v72 = vadd.f32 %v70, 0.0
    %v73 = vadd.f32 %v71, 0.0
    %v74 = vadd.f32 %v62, %v72
    %v75 = vadd.f32 %v63, %v73
    %76 = vst [vmem:[#allocation2] sm:$0xff] %v74
    %77 = vst [vmem:[#allocation2 + $0x8] sm:$0xff] %v75
    // Predicated region
    $region22: #{tpu_custom_call.1} parent=1 // pred_check
      %p78 = pneg %p56
    $region23: #{tpu_custom_call.1} parent=1 // pred_check_branch
      %80 = sbr.rel (%p78) target = $region25
    $region24: #{tpu_custom_call.1} parent=1 // pred_region
      %v81 = vld [vmem:[#allocation2] sm:$0xff]
      %v82 = vld [vmem:[#allocation2 + $0x8] sm:$0xff]
      %v83 = vadd.f32 %v81, %v82
      %84 = vadd.xlane.f32.xlu0 %v83
      %v85 = vpop.xlane.xlu0 %84
      %v86 = vrot.slane %v85, 4
      %v87 = vadd.f32 %v85, %v86
      %v88 = vrot.slane %v87, 2
      %v89 = vadd.f32 %v87, %v88
      %v90 = vrot.slane %v89, 1
      %v91 = vadd.f32 %v89, %v90
      %s92 = vtos %v91
      %v93 = vstv %s92
      %vm94 = vcmask 0
      %95 = vst.msk [vmem:[#allocation8] sm:$0x1] %vm94, %v93
    $region25: #{tpu_custom_call.1} parent=1 // pred_fallthru
      _
    // Predicated region
    $region26: #{tpu_custom_call.1} parent=1 // pred_check
      _
    $region27: #{tpu_custom_call.1} parent=1 // pred_check_branch
      %97 = sbr.rel (0) target = $region29
    $region28: #{tpu_custom_call.1} parent=1 // pred_region
      %99 = vsyncadd [#allocation5], 0
      %s101 = sshll.u32 [#allocation8], 4
      %s102 = int_to_ptr.vmem [resolvable:$true] %s101
      %s103 = sshll.u32 %s2, 4
      %s104 = int_to_ptr.hbm [resolvable:$true] %s103
      %106 = dma.vmem_to_hbm [thread:$0]  %s102, 16, %s104, [#allocation5]
    $region29: #{tpu_custom_call.1} parent=1 // pred_fallthru
      _
    // Predicated region
    $region30: #{tpu_custom_call.1} parent=1 // pred_check
      _
    $region31: #{tpu_custom_call.1} parent=1 // pred_check_branch
      %108 = sbr.rel (0) target = $region33
    $region32: #{tpu_custom_call.1} parent=1 // pred_region
      %110 = dma.done [#allocation5], 16
    $region33: #{tpu_custom_call.1} parent=1 // pred_fallthru
      _
    %111 = vsyncpa [#allocation4], 1
    %112 = vsyncpa [#allocation7], 1
    %113 = vsyncpa [#allocation5], 1

</llo_original>
